<compile_context>
chip_gen: v7x
topology: tpu7x:2x2x1
jax: 0.10.0
libtpu: 0.0.40
codegen_flags: <defaults>
</compile_context>

<pallas_src>
import functools

import jax
import jax.numpy as jnp
from jax.experimental import pallas as pl
from jax.experimental.pallas import tpu as pltpu


def _npair_loss_kernel(q_ref, k_ref, lq_ref, lk_ref, loss_ref, valid_ref,
                       *, inv_tau, n_real):
    i = pl.program_id(0)
    tm = q_ref.shape[0]
    n_pad = k_ref.shape[0]

    # L2-normalize (squared-norm accumulated in f32, rsqrt on the EUP).
    q = q_ref[...].astype(jnp.float32)                                   # (tm, D)
    k = k_ref[...].astype(jnp.float32)                                   # (n_pad, D)
    q_n = (q * jax.lax.rsqrt(jnp.sum(q * q, axis=-1, keepdims=True))).astype(jnp.bfloat16)
    k_n = (k * jax.lax.rsqrt(jnp.sum(k * k, axis=-1, keepdims=True))).astype(jnp.bfloat16)

    # Cosine similarities: contract the last dim of both operands directly
    # (no transposed copy of the key matrix), bf16 in / f32 accumulate.
    cos = jax.lax.dot_general(q_n, k_n, (((1,), (1,)), ((), ())),
                              preferred_element_type=jnp.float32)        # (tm, n_pad)

    # Stabilized exponent: cos <= 1 after normalization, so subtracting the
    # constant 1/tau is exact for the pos/total ratio and prevents overflow
    # for small tau.
    sims = jnp.exp((cos - 1.0) * inv_tau)

    # Tile-scale masks: drop the diagonal (j == i) and, if padded, fake columns.
    col = jax.lax.broadcasted_iota(jnp.int32, (tm, n_pad), 1)
    row = i * tm + jax.lax.broadcasted_iota(jnp.int32, (tm, n_pad), 0)
    keep = col != row
    if n_pad != n_real:                                                  # static
        keep = jnp.logical_and(keep, col < n_real)
    same = jnp.logical_and(lq_ref[...] == lk_ref[...], keep)             # (tm, n_pad)

    total_sim = jnp.sum(jnp.where(keep, sims, 0.0), axis=-1, keepdims=True)   # (tm, 1)
    total_pos = jnp.sum(jnp.where(same, sims, 0.0), axis=-1, keepdims=True)   # (tm, 1)
    pos_count = jnp.sum(same.astype(jnp.float32), axis=-1, keepdims=True)

    has_pos = pos_count > 0.0
    if n_pad != n_real:                                                  # static
        row_local = jax.lax.broadcasted_iota(jnp.int32, (tm, 1), 0)
        has_pos = jnp.logical_and(has_pos, (i * tm + row_local) < n_real)

    # -log(pos / total) == log(total) - log(pos): two EUP logs, no VPU divide.
    loss_i = jnp.where(has_pos, jnp.log(total_sim) - jnp.log(total_pos), 0.0)

    loss_ref[...] = loss_i
    valid_ref[...] = has_pos.astype(jnp.float32)


def _round_up(x, m):
    return ((x + m - 1) // m) * m


def npair_loss(embs, labels, tau=1.0, block_m=128):
    assert block_m % 8 == 0
    n, d = embs.shape
    if n <= block_m:
        tm = _round_up(max(n, 1), 8)
        n_pad = tm
    else:
        tm = block_m
        n_pad = _round_up(n, tm)
    num_blocks = n_pad // tm

    labels_i32 = labels.astype(jnp.int32)
    if n_pad != n:
        pad = n_pad - n
        # Pad embeddings with ones (non-zero norm -> no NaNs); padded rows/cols
        # are masked out inside the kernel by index, so label values don't matter.
        embs_p = jnp.concatenate([embs, jnp.ones((pad, d), embs.dtype)], axis=0)
        labels_p = jnp.concatenate([labels_i32, jnp.full((pad,), -1, jnp.int32)])
    else:
        embs_p = embs
        labels_p = labels_i32

    labels_col = labels_p.reshape(n_pad, 1)   # (N, 1) layout for query rows
    labels_row = labels_p.reshape(1, n_pad)   # (1, N) layout for key columns

    # Size the scoped VMEM from the actual tiles instead of the default limit.
    itemsize = jnp.dtype(embs.dtype).itemsize
    est = (2 * (tm * d + n_pad * d) * itemsize   # double-buffered q + resident k
           + 8 * tm * n_pad * 4                  # (tm, n_pad) f32 temporaries
           + 8 * (tm + n_pad) * 4)               # labels + per-row outputs
    vmem_limit = int(min(max(4 * est, 32 * 1024 * 1024), 64 * 1024 * 1024))

    loss_rows, valid_rows = pl.pallas_call(
        functools.partial(_npair_loss_kernel, inv_tau=1.0 / float(tau), n_real=n),
        out_shape=(jax.ShapeDtypeStruct((n_pad, 1), jnp.float32),
                   jax.ShapeDtypeStruct((n_pad, 1), jnp.float32)),
        grid=(num_blocks,),
        in_specs=(
            pl.BlockSpec((tm, d), lambda i: (i, 0)),       # query row block
            pl.BlockSpec((n_pad, d), lambda i: (0, 0)),    # full key matrix (resident)
            pl.BlockSpec((tm, 1), lambda i: (i, 0)),       # labels, column layout
            pl.BlockSpec((1, n_pad), lambda i: (0, 0)),    # labels, row layout
        ),
        out_specs=(
            pl.BlockSpec((tm, 1), lambda i: (i, 0)),
            pl.BlockSpec((tm, 1), lambda i: (i, 0)),
        ),
        compiler_params=pltpu.CompilerParams(
            dimension_semantics=("parallel",),
            vmem_limit_bytes=vmem_limit,
        ),
    )(embs_p, embs_p, labels_col, labels_row)

    loss_sum = jnp.sum(loss_rows)
    n_valid = jnp.sum(valid_rows)
    return jnp.where(n_valid > 0.0, loss_sum / n_valid, 0.0).reshape(1)


def npair_loss_ref(embs, labels, tau=1.0):
    # Plain-JAX reference of the PyTorch loop, for a sanity check.
    embs = embs.astype(jnp.float32)
    embs = embs / jnp.linalg.norm(embs, axis=-1, keepdims=True)
    sims = jnp.exp(embs @ embs.T / tau)
    n = embs.shape[0]
    offdiag = ~jnp.eye(n, dtype=bool)
    same = labels[:, None] == labels[None, :]
    pos = same & offdiag
    total_sim = jnp.sum(jnp.where(offdiag, sims, 0.0), axis=-1)
    total_pos = jnp.sum(jnp.where(pos, sims, 0.0), axis=-1)
    has_pos = jnp.sum(pos, axis=-1) > 0
    loss_i = jnp.where(has_pos, -jnp.log(total_pos / total_sim), 0.0)
    n_valid = jnp.sum(has_pos)
    return jnp.where(n_valid > 0, jnp.sum(loss_i) / n_valid, 0.0).reshape(1)


# TODO(synk): label_rearrange is host-side Python index bookkeeping (torch.unique /
# list.index over ragged per-clip id lists) and has no tensor-kernel equivalent.

if __name__ == "__main__":
    key = jax.random.PRNGKey(0)
    k1, k2, k3 = jax.random.split(key, 3)

    # Small case matching the module's usage: 8 embeddings, hidden=32.
    n, d = 8, 32
    embs = jax.random.normal(k1, (n, d), dtype=jnp.float32)
    labels = jnp.array([0, 0, 1, 1, 2, 3, 3, 4], dtype=jnp.int32)

    loss = npair_loss(embs, labels, tau=1.0)
    jax.block_until_ready(loss)
    ref = npair_loss_ref(embs, labels, tau=1.0)
    # Kernel uses bf16 MXU operands -> small deviation from the f32 reference.
    assert jnp.allclose(loss, ref, atol=3e-2, rtol=3e-2), (loss, ref)

    # All-singleton labels -> every row skipped -> loss is exactly 0.
    loss0 = npair_loss(embs, jnp.arange(n, dtype=jnp.int32), tau=1.0)
    jax.block_until_ready(loss0)
    assert jnp.allclose(loss0, jnp.zeros((1,), jnp.float32)), loss0

    # Multi-block grid with row/column padding (n=20, block_m=16 -> grid=2, pad=12).
    n2, d2 = 20, 32
    embs2 = jax.random.normal(k2, (n2, d2), dtype=jnp.float32)
    labels2 = jax.random.randint(k3, (n2,), 0, 6, dtype=jnp.int32)
    loss2 = npair_loss(embs2, labels2, tau=0.5, block_m=16)
    jax.block_until_ready(loss2)
    ref2 = npair_loss_ref(embs2, labels2, tau=0.5)
    assert jnp.allclose(loss2, ref2, atol=5e-2, rtol=5e-2), (loss2, ref2)

    print("KERNEL_OK")
</pallas_src>

<mosaic_0001>
module attributes {stable_mosaic.version = 11 : i64} {
  func.func @_npair_loss_kernel(%arg0: i32, %arg1: memref<8x32xf32, #tpu.memory_space<vmem>>, %arg2: memref<8x32xf32, #tpu.memory_space<vmem>>, %arg3: memref<8x1xi32, #tpu.memory_space<vmem>>, %arg4: memref<1x8xi32, #tpu.memory_space<vmem>>, %arg5: memref<8x1xf32, #tpu.memory_space<vmem>>, %arg6: memref<8x1xf32, #tpu.memory_space<vmem>>) attributes {dimension_semantics = [#tpu.dimension_semantics<parallel>], iteration_bounds = array<i64: 1>, scalar_prefetch = 0 : i64, scratch_operands = 0 : i64, tpu.core_type = #tpu.core_type<tc>, window_params = [{transform_indices = @transform_0, window_bounds = array<i64: 8, 32>}, {pipeline_mode = #tpu.pipeline_mode<synchronous>, transform_indices = @transform_1, window_bounds = array<i64: 8, 32>}, {transform_indices = @transform_2, window_bounds = array<i64: 8, 1>}, {pipeline_mode = #tpu.pipeline_mode<synchronous>, transform_indices = @transform_3, window_bounds = array<i64: 1, 8>}, {transform_indices = @transform_4, window_bounds = array<i64: 8, 1>}, {transform_indices = @transform_5, window_bounds = array<i64: 8, 1>}]} {
    %c0 = arith.constant 0 : index
    %c0_0 = arith.constant 0 : index
    %0 = vector.load %arg1[%c0, %c0_0] : memref<8x32xf32, #tpu.memory_space<vmem>>, vector<8x32xf32>
    %c0_1 = arith.constant 0 : index
    %c0_2 = arith.constant 0 : index
    %1 = vector.load %arg2[%c0_1, %c0_2] : memref<8x32xf32, #tpu.memory_space<vmem>>, vector<8x32xf32>
    %2 = arith.mulf %0, %0 : vector<8x32xf32>
    %cst = arith.constant dense<0.000000e+00> : vector<8xf32>
    %3 = vector.multi_reduction <add>, %2, %cst [1] : vector<8x32xf32> to vector<8xf32>
    %4 = vector.shape_cast %3 : vector<8xf32> to vector<8x1xf32>
    %5 = math.rsqrt %4 : vector<8x1xf32>
    %6 = vector.broadcast %5 : vector<8x1xf32> to vector<8x32xf32>
    %7 = arith.mulf %0, %6 : vector<8x32xf32>
    %8 = arith.truncf %7 : vector<8x32xf32> to vector<8x32xbf16>
    %9 = arith.mulf %1, %1 : vector<8x32xf32>
    %cst_3 = arith.constant dense<0.000000e+00> : vector<8xf32>
    %10 = vector.multi_reduction <add>, %9, %cst_3 [1] : vector<8x32xf32> to vector<8xf32>
    %11 = vector.shape_cast %10 : vector<8xf32> to vector<8x1xf32>
    %12 = math.rsqrt %11 : vector<8x1xf32>
    %13 = vector.broadcast %12 : vector<8x1xf32> to vector<8x32xf32>
    %14 = arith.mulf %1, %13 : vector<8x32xf32>
    %15 = arith.truncf %14 : vector<8x32xf32> to vector<8x32xbf16>
    %cst_4 = arith.constant dense<0.000000e+00> : vector<8x8xf32>
    %16 = tpu.matmul %8, %15, %cst_4 {dimension_numbers = #tpu.dot_dimension_numbers<[1], [1], [0], [0], [0, 0, 1, 0], [], []>} : vector<8x32xbf16>, vector<8x32xbf16>, vector<8x8xf32> -> vector<8x8xf32>
    %cst_5 = arith.constant 1.000000e+00 : f32
    %17 = vector.broadcast %cst_5 : f32 to vector<8x8xf32>
    %18 = arith.subf %16, %17 : vector<8x8xf32>
    %cst_6 = arith.constant 1.000000e+00 : f32
    %19 = vector.broadcast %cst_6 : f32 to vector<8x8xf32>
    %20 = arith.mulf %18, %19 : vector<8x8xf32>
    %21 = math.exp %20 : vector<8x8xf32>
    %22 = tpu.iota {dimensions = array<i32: 1>} : vector<8x8xi32>
    %c8_i32 = arith.constant 8 : i32
    %23 = arith.muli %arg0, %c8_i32 : i32
    %24 = tpu.iota {dimensions = array<i32: 0>} : vector<8x8xi32>
    %25 = vector.broadcast %23 : i32 to vector<8x8xi32>
    %26 = arith.addi %25, %24 : vector<8x8xi32>
    %27 = arith.cmpi ne, %22, %26 : vector<8x8xi32>
    %c0_7 = arith.constant 0 : index
    %c0_8 = arith.constant 0 : index
    %28 = vector.load %arg3[%c0_7, %c0_8] : memref<8x1xi32, #tpu.memory_space<vmem>>, vector<8x1xi32>
    %c0_9 = arith.constant 0 : index
    %c0_10 = arith.constant 0 : index
    %29 = vector.load %arg4[%c0_9, %c0_10] : memref<1x8xi32, #tpu.memory_space<vmem>>, vector<1x8xi32>
    %30 = vector.broadcast %28 : vector<8x1xi32> to vector<8x8xi32>
    %31 = vector.broadcast %29 : vector<1x8xi32> to vector<8x8xi32>
    %32 = arith.cmpi eq, %30, %31 : vector<8x8xi32>
    %33 = arith.andi %32, %27 : vector<8x8xi1>
    %cst_11 = arith.constant 0.000000e+00 : f32
    %34 = vector.broadcast %cst_11 : f32 to vector<8x8xf32>
    %35 = arith.select %27, %21, %34 : vector<8x8xi1>, vector<8x8xf32>
    %cst_12 = arith.constant dense<0.000000e+00> : vector<8xf32>
    %36 = vector.multi_reduction <add>, %35, %cst_12 [1] : vector<8x8xf32> to vector<8xf32>
    %37 = vector.shape_cast %36 : vector<8xf32> to vector<8x1xf32>
    %cst_13 = arith.constant 0.000000e+00 : f32
    %38 = vector.broadcast %cst_13 : f32 to vector<8x8xf32>
    %39 = arith.select %33, %21, %38 : vector<8x8xi1>, vector<8x8xf32>
    %cst_14 = arith.constant dense<0.000000e+00> : vector<8xf32>
    %40 = vector.multi_reduction <add>, %39, %cst_14 [1] : vector<8x8xf32> to vector<8xf32>
    %41 = vector.shape_cast %40 : vector<8xf32> to vector<8x1xf32>
    %42 = arith.extui %33 : vector<8x8xi1> to vector<8x8xi32>
    %43 = arith.sitofp %42 : vector<8x8xi32> to vector<8x8xf32>
    %cst_15 = arith.constant dense<0.000000e+00> : vector<8xf32>
    %44 = vector.multi_reduction <add>, %43, %cst_15 [1] : vector<8x8xf32> to vector<8xf32>
    %45 = vector.shape_cast %44 : vector<8xf32> to vector<8x1xf32>
    %cst_16 = arith.constant 0.000000e+00 : f32
    %46 = vector.broadcast %cst_16 : f32 to vector<8x1xf32>
    %47 = arith.cmpf ogt, %45, %46 : vector<8x1xf32>
    %48 = math.log %37 : vector<8x1xf32>
    %49 = math.log %41 : vector<8x1xf32>
    %50 = arith.subf %48, %49 : vector<8x1xf32>
    %cst_17 = arith.constant 0.000000e+00 : f32
    %51 = vector.broadcast %cst_17 : f32 to vector<8x1xf32>
    %52 = arith.select %47, %50, %51 : vector<8x1xi1>, vector<8x1xf32>
    %c0_18 = arith.constant 0 : index
    %c0_19 = arith.constant 0 : index
    %53 = vector.load %arg5[%c0_18, %c0_19] : memref<8x1xf32, #tpu.memory_space<vmem>>, vector<8x1xf32>
    tpu.vector_store %arg5[%c0_18, %c0_19], %52 {strides = array<i32>} : memref<8x1xf32, #tpu.memory_space<vmem>>, vector<8x1xf32>,
    %54 = arith.extui %47 : vector<8x1xi1> to vector<8x1xi32>
    %55 = arith.sitofp %54 : vector<8x1xi32> to vector<8x1xf32>
    %c0_20 = arith.constant 0 : index
    %c0_21 = arith.constant 0 : index
    %56 = vector.load %arg6[%c0_20, %c0_21] : memref<8x1xf32, #tpu.memory_space<vmem>>, vector<8x1xf32>
    tpu.vector_store %arg6[%c0_20, %c0_21], %55 {strides = array<i32>} : memref<8x1xf32, #tpu.memory_space<vmem>>, vector<8x1xf32>,
    return
  }
  func.func @transform_0(%arg0: i32) -> (i32, i32) {
    %c0_i32 = arith.constant 0 : i32
    %c0_i32_0 = arith.constant 0 : i32
    return %arg0, %c0_i32 : i32, i32
  }
  func.func @transform_1(%arg0: i32) -> (i32, i32) {
    %c0_i32 = arith.constant 0 : i32
    %c0_i32_0 = arith.constant 0 : i32
    %c0_i32_1 = arith.constant 0 : i32
    return %c0_i32, %c0_i32_0 : i32, i32
  }
  func.func @transform_2(%arg0: i32) -> (i32, i32) {
    %c0_i32 = arith.constant 0 : i32
    %c0_i32_0 = arith.constant 0 : i32
    return %arg0, %c0_i32 : i32, i32
  }
  func.func @transform_3(%arg0: i32) -> (i32, i32) {
    %c0_i32 = arith.constant 0 : i32
    %c0_i32_0 = arith.constant 0 : i32
    %c0_i32_1 = arith.constant 0 : i32
    return %c0_i32, %c0_i32_0 : i32, i32
  }
  func.func @transform_4(%arg0: i32) -> (i32, i32) {
    %c0_i32 = arith.constant 0 : i32
    %c0_i32_0 = arith.constant 0 : i32
    return %arg0, %c0_i32 : i32, i32
  }
  func.func @transform_5(%arg0: i32) -> (i32, i32) {
    %c0_i32 = arith.constant 0 : i32
    %c0_i32_0 = arith.constant 0 : i32
    return %arg0, %c0_i32 : i32, i32
  }
}

</mosaic_0001>

<llo_original>
// kernel: tpu_custom_call.1
$region0: #{tpu_custom_call.1}
  #allocation0 [shape = 'u32[]', space=smem, size = 0x4, offset = 0x4, fixed_abs, tag = 'smem constant byte address 0x4 - core index']
  #allocation1 [shape = 'u32[144,128]{1,0:T(1,128)}', space=vmem, size = 0x12000, scoped, tag = 'internal scratch']
  %s0 = inlined_call_operand.vmem [shape: f32[8,32], index: 0, kind: input, shape index: {}]
  %s1 = inlined_call_operand.hbm [shape: f32[8,32], index: 1, kind: input, shape index: {}]
  %s2 = inlined_call_operand.vmem [shape: s32[8,1], index: 2, kind: input, shape index: {}]
  %s3 = inlined_call_operand.vmem [shape: s32[1,8], index: 3, kind: input, shape index: {}]
  %s4 = inlined_call_operand.vmem [shape: f32[8,1], index: 4, kind: output, shape index: {0}]
  %s5 = inlined_call_operand.vmem [shape: f32[8,1], index: 5, kind: output, shape index: {1}]
  %6 = xla_tuple %s4, %s5
  %s7 = sld [smem:[#allocation0]]
  $region38: #{tpu_custom_call.1} parent=0
    _
  %s9 = ssub.s32 1, %s7
  %s10 = scalar_select 0, %s9, %s7
  $region1: #{tpu_custom_call.1} parent=0
    #allocation2 [shape = 'u8[4096]{0}', space=vmem, size = 0x1000, scoped, tag = 'input window, operand 1, single buffered']
    #allocation3 [shape = 's32[1]{0}', space=sflag, size = 0x4, scoped, tag = 'scoped memory for tpu_custom_call.1']
    %11 = vsyncpa [#allocation3], 0
    // Predicated region
    $region2: #{tpu_custom_call.1} parent=1 // pred_check
      _
    $region3: #{tpu_custom_call.1} parent=1 // pred_check_branch
      %13 = sbr.rel (0) target = $region5
    $region4: #{tpu_custom_call.1} parent=1 // pred_region
      _
    $region5: #{tpu_custom_call.1} parent=1 // pred_fallthru
      _
    // Predicated region
    $region6: #{tpu_custom_call.1} parent=1 // pred_check
      _
    $region7: #{tpu_custom_call.1} parent=1 // pred_check_branch
      %15 = sbr.rel (0) target = $region9
    $region8: #{tpu_custom_call.1} parent=1 // pred_region
      %s17 = ssub.s32 128, 128
      %18 = vsyncadd [#allocation3], %s17
      %s20 = sshll.u32 [#allocation2], 4
      %s21 = int_to_ptr.vmem [resolvable:$true] %s20
      %23 = dma.hbm_to_vmem [thread:$0]  %s1, 128, %s21, [#allocation3]
    $region9: #{tpu_custom_call.1} parent=1 // pred_fallthru
      _
    // Predicated region
    $region10: #{tpu_custom_call.1} parent=1 // pred_check
      _
    $region11: #{tpu_custom_call.1} parent=1 // pred_check_branch
      %25 = sbr.rel (0) target = $region13
    $region12: #{tpu_custom_call.1} parent=1 // pred_region
      _
    $region13: #{tpu_custom_call.1} parent=1 // pred_fallthru
      _
    // Predicated region
    $region14: #{tpu_custom_call.1} parent=1 // pred_check
      _
    $region15: #{tpu_custom_call.1} parent=1 // pred_check_branch
      %27 = sbr.rel (0) target = $region17
    $region16: #{tpu_custom_call.1} parent=1 // pred_region
      _
    $region17: #{tpu_custom_call.1} parent=1 // pred_fallthru
      _
    // Predicated region
    $region18: #{tpu_custom_call.1} parent=1 // pred_check
      _
    $region19: #{tpu_custom_call.1} parent=1 // pred_check_branch
      %29 = sbr.rel (0) target = $region21
    $region20: #{tpu_custom_call.1} parent=1 // pred_region
      %30 = dma.done [#allocation3], 128
    $region21: #{tpu_custom_call.1} parent=1 // pred_fallthru
      _
    %v32 = vld [vmem:[%s0] sm:$0xff]
    %v33 = vld [vmem:[#allocation2] sm:$0xff]
    %v34 = vmul.f32 %v32, %v32
    %vm35 = vcmask 261120
    %v36 = vsel %vm35, %v34, 0.0
    %37 = vadd.xlane.f32.xlu0 %v36
    %v38 = vpop.xlane.xlu0 %37
    %v39 = vrsqrt.pop %v38
    %v40 = vmul.f32 %v32, %v39
    %v41 = vpack.c.bf16 %v40, %v40
    %v42 = vmul.f32 %v33, %v33
    %v43 = vsel %vm35, %v42, 0.0
    %44 = vadd.xlane.f32.xlu0 %v43
    %v45 = vpop.xlane.xlu0 %44
    %v46 = vrsqrt.pop %v45
    %v47 = vmul.f32 %v33, %v46
    %v48 = vpack.c.bf16 %v47, %v47
    %v50 = vsel %vm35, %v41, 0
    %v53 = vsel %vm35, %v48, 0
    %55 = vmatprep.subr.bf16.mxu0 0
    %56 = vmatpush1.bf16.xpose.msra.mxu0 %v53
    %57 = vmatprep.subr.bf16.mxu0 0
    %58 = vmatpush1.bf16.xpose.msra.mxu0 0
    %59 = vmatprep.subr.bf16.mxu0 0
    %60 = vmatpush1.bf16.xpose.msra.mxu0 0
    %61 = vmatprep.subr.bf16.mxu0 0
    %62 = vmatpush1.bf16.xpose.msra.mxu0 0
    %63 = vmatprep.subr.bf16.mxu0 0
    %64 = vmatpush1.bf16.xpose.msra.mxu0 0
    %65 = vmatprep.subr.bf16.mxu0 0
    %66 = vmatpush1.bf16.xpose.msra.mxu0 0
    %67 = vmatprep.subr.bf16.mxu0 0
    %68 = vmatpush1.bf16.xpose.msra.mxu0 0
    %69 = vmatprep.subr.bf16.mxu0 0
    %70 = vmatpush1.bf16.xpose.msra.mxu0 0
    %71 = vmatprep.subr.bf16.mxu0 0
    %72 = vmatpush1.bf16.xpose.msra.mxu0 0
    %73 = vmatprep.subr.bf16.mxu0 0
    %74 = vmatpush1.bf16.xpose.msra.mxu0 0
    %75 = vmatprep.subr.bf16.mxu0 0
    %76 = vmatpush1.bf16.xpose.msra.mxu0 0
    %77 = vmatprep.subr.bf16.mxu0 0
    %78 = vmatpush1.bf16.xpose.msra.mxu0 0
    %79 = vmatprep.subr.bf16.mxu0 0
    %80 = vmatpush1.bf16.xpose.msra.mxu0 0
    %81 = vmatprep.subr.bf16.mxu0 0
    %82 = vmatpush1.bf16.xpose.msra.mxu0 0
    %83 = vmatprep.subr.bf16.mxu0 0
    %84 = vmatpush1.bf16.xpose.msra.mxu0 0
    %85 = vmatprep.subr.bf16.mxu0 0
    %86 = vmatpush1.bf16.xpose.msra.mxu0 0
    %87 = vmatprep.mubr.bf16.mxu0 0
    %88 = vmatmul.mubr.bf16.gmra.mrb[0].mxu0 %v50
    %v89 = vpop.f32.mrb[0].mxu0
    %v90 = vadd.f32 0.0, %v89
    %v91 = vpop.f32.mrb[0].mxu0
    %v92 = vpop.f32.mrb[0].mxu0
    %v93 = vpop.f32.mrb[0].mxu0
    %94 = vdwg.mxu0
    %v95 = vsub.f32 %v90, 1.0
    %v96 = vmul.f32 %v95, 1.442695
    %v97 = vpow.pop %v96
    %v98 = vlaneseq
    %v99 = vand.u32 %v98, 127
    %s100 = smul.u32 0, 8
    %v101 = vlaneseq
    %v102 = vshrl.u32 %v101, 7
    %v103 = vstv %s100
    %v104 = vadd.s32 %v103, %v102
    %vm105 = vcmp.ne.s32.totalorder %v99, %v104
    %v106 = vld [vmem:[%s2] sm:$0xff]
    %v107 = vld [vmem:[%s3] sm:$0x1]
    %108 = vset.pattern.permute.xlu0 0
    %109 = vperm.xlu0 %108, %v106
    %v110 = vpop.permute.xlu0 %109
    %v111 = vlaneseq
    %v112 = vshrl.u32 %v111, 7
    %v113 = vsub.s32 0, %v112
    %v114 = vrot.slane %v107, %v113
    %vm115 = vcmp.eq.s32.totalorder %v110, %v114
    %vm116 = vmand %vm115, %vm105
    %v117 = vsel %vm105, %v97, 0.0
    %vm118 = vcmask 64512
    %v119 = vsel %vm118, %v117, 0.0
    %120 = vadd.xlane.f32.xlu0 %v119
    %v121 = vpop.xlane.xlu0 %120
    %v122 = vsel %vm116, %v97, 0.0
    %v123 = vsel %vm118, %v122, 0.0
    %124 = vadd.xlane.f32.xlu0 %v123
    %v125 = vpop.xlane.xlu0 %124
    %v126 = vsel %vm116, 1, 0
    %v127 = vcvt.s32.f32 %v126
    %v128 = vsel %vm118, %v127, 0.0
    %129 = vadd.xlane.f32.xlu0 %v128
    %v130 = vpop.xlane.xlu0 %129
    %vm131 = vcmp.gt.f32.partialorder %v130, 0.0
    %v132 = vlog2.pop %v121
    %v133 = vmul.f32 %v132, 0.6931472
    %v134 = vlog2.pop %v125
    %v135 = vmul.f32 %v134, 0.6931472
    %v136 = vsub.f32 %v133, %v135
    %v137 = vsel %vm131, %v136, 0.0
    %vm138 = vcmask 7168
    %139 = vst.msk [vmem:[%s4] sm:$0xff] %vm138, %v137
    %v140 = vsel %vm131, 1, 0
    %v141 = vcvt.s32.f32 %v140
    %142 = vst.msk [vmem:[%s5] sm:$0xff] %vm138, %v141
    // Predicated region
    $region22: #{tpu_custom_call.1} parent=1 // pred_check
      _
    $region23: #{tpu_custom_call.1} parent=1 // pred_check_branch
      %144 = sbr.rel (0) target = $region25
    $region24: #{tpu_custom_call.1} parent=1 // pred_region
      _
    $region25: #{tpu_custom_call.1} parent=1 // pred_fallthru
      _
    // Predicated region
    $region26: #{tpu_custom_call.1} parent=1 // pred_check
      _
    $region27: #{tpu_custom_call.1} parent=1 // pred_check_branch
      %146 = sbr.rel (0) target = $region29
    $region28: #{tpu_custom_call.1} parent=1 // pred_region
      _
    $region29: #{tpu_custom_call.1} parent=1 // pred_fallthru
      _
    // Predicated region
    $region30: #{tpu_custom_call.1} parent=1 // pred_check
      _
    $region31: #{tpu_custom_call.1} parent=1 // pred_check_branch
      %148 = sbr.rel (0) target = $region33
    $region32: #{tpu_custom_call.1} parent=1 // pred_region
      _
    $region33: #{tpu_custom_call.1} parent=1 // pred_fallthru
      _
    // Predicated region
    $region34: #{tpu_custom_call.1} parent=1 // pred_check
      _
    $region35: #{tpu_custom_call.1} parent=1 // pred_check_branch
      %150 = sbr.rel (0) target = $region37
    $region36: #{tpu_custom_call.1} parent=1 // pred_region
      _
    $region37: #{tpu_custom_call.1} parent=1 // pred_fallthru
      _
    %151 = vsyncpa [#allocation3], 1

</llo_original>
